<compile_context>
chip_gen: v6e
topology: v6e:2x2x1
jax: 0.10.0
libtpu: 0.0.40
codegen_flags: <defaults>
</compile_context>

<pallas_src>
import functools

import jax
import jax.numpy as jnp
from jax.experimental import pallas as pl
from jax.experimental.pallas import tpu as pltpu

_LANES = 128                      # TPU vreg lane width
_TM_MAX_AFFINE = 8192             # 4 MiB/buffer; in+out double-buffered ~= 16 MiB
_TM_MAX_FUSED = 16384             # 8 MiB/buffer; out-only double-buffered ~= 16 MiB
_VMEM_LIMIT = 32 * 1024 * 1024    # explicit scoped-VMEM limit (covers v5e's 16 MiB default)


# ----------------------------- kernels ------------------------------------- #

def _affine_kernel(x_ref, w_ref, b_ref, o_ref):
    # y = x_packed @ W + b_row, f32 accumulation on the MXU.
    # W is already kron(I, A.T), so no transpose / XLU work inside the kernel.
    y = jnp.dot(x_ref[...], w_ref[...], preferred_element_type=jnp.float32)
    o_ref[...] = (y + b_ref[...]).astype(o_ref.dtype)


def _sample_affine_kernel(seed_ref, w_ref, b_ref, o_ref):
    # Fused sampling: draw x ~ N(0, I) with the on-chip PRNG, then apply the
    # packed affine transform.  Per-tile seeding (base seed + tile index handed
    # to the PRNG's seed hash) keeps tiles independent and deterministic for a
    # given (seed, tiling), regardless of which core runs which tile.
    pltpu.prng_seed(seed_ref[0], pl.program_id(0))
    x = pltpu.stateful_normal(o_ref.shape, jnp.float32)
    y = jnp.dot(x, w_ref[...], preferred_element_type=jnp.float32)
    o_ref[...] = (y + b_ref[...]).astype(o_ref.dtype)
    # TODO(synk): if a v7x bundle dump shows this path EUP-bound, switch to
    # pltpu.prng_random_bits + a VPU-dominant normal conversion.


# ----------------------------- helpers -------------------------------------- #

def _packing_factor(d):
    # Pack P consecutive rows per 128-lane row when D divides 128.
    if d <= _LANES and _LANES % d == 0:
        return _LANES // d
    return 1


def _choose_tile(mp, tm_max):
    # Packed-row tile size.  Emits >= 2 sublane-aligned tiles whenever mp > 8
    # (so both v7x TensorCores get work); tiny problems use one full-array tile.
    if mp <= 8:
        return mp                              # block == full array dim (allowed)
    half = -(-mp // 2)
    tm = ((half + 7) // 8) * 8                 # sublane-aligned
    return min(tm, tm_max)


def _pack_params(A, b, p):
    d = A.shape[0]
    a_t = A.T                                  # pre-transpose the tiny parameter once
    w = a_t if p == 1 else jnp.kron(jnp.eye(p, dtype=A.dtype), a_t)
    b_row = jnp.tile(b.reshape(1, d), (1, p))
    return w, b_row


def _compiler_params():
    return pltpu.CompilerParams(
        dimension_semantics=("parallel",),     # shard row tiles across TCs (v7x)
        vmem_limit_bytes=_VMEM_LIMIT,
    )


@functools.lru_cache(maxsize=1)
def _tpu_backend():
    # One-time, explicit capability check (no per-call exception probing).
    return jax.devices()[0].platform == "tpu"


# ----------------------------- wrappers ------------------------------------- #

def affine_transform(A, b, x):
    """y = x @ A.T + b for caller-supplied x, via the lane-dense packed kernel."""
    batch, n, d = x.shape
    m = batch * n
    p = _packing_factor(d)
    k = p * d
    mp = -(-m // p)                            # packed rows (exact, no tile rounding)
    rows = mp * p
    tm = _choose_tile(mp, _TM_MAX_AFFINE)
    grid = pl.cdiv(mp, tm)                     # ragged last tile handled by Pallas

    x2d = x.reshape(m, d)
    if rows != m:
        # TODO(synk): ragged packing tail (m % P != 0) pays one pad copy; an
        # in-kernel masked tail would avoid it.  Common shapes hit rows == m.
        x2d = jnp.pad(x2d, ((0, rows - m), (0, 0)))
    x_packed = x2d.reshape(mp, k)              # free row-major reshape when rows == m

    w, b_row = _pack_params(A, b, p)

    out = pl.pallas_call(
        _affine_kernel,
        out_shape=jax.ShapeDtypeStruct((mp, k), x.dtype),
        grid_spec=pltpu.PrefetchScalarGridSpec(
            num_scalar_prefetch=0,
            grid=(grid,),
            in_specs=[
                pl.BlockSpec((tm, k), lambda i: (i, 0)),   # packed x tile
                pl.BlockSpec((k, k), lambda i: (0, 0)),    # W (VMEM-resident)
                pl.BlockSpec((1, k), lambda i: (0, 0)),    # bias row (resident)
            ],
            out_specs=pl.BlockSpec((tm, k), lambda i: (i, 0)),
        ),
        compiler_params=_compiler_params(),
        cost_estimate=pl.CostEstimate(
            flops=2 * mp * k * k,
            transcendentals=0,
            bytes_accessed=4 * (2 * mp * k + k * k + k),
        ),
    )(x_packed, w, b_row)

    y2d = out.reshape(rows, d)                 # free reshape
    if rows != m:
        y2d = y2d[:m]
    return y2d.reshape(batch, n, d)


def _forward_fused_sampling(A, b, n_samples, batch_size, seed):
    d = A.shape[0]
    m = batch_size * n_samples
    p = _packing_factor(d)
    k = p * d
    mp = -(-m // p)
    rows = mp * p
    tm = _choose_tile(mp, _TM_MAX_FUSED)
    grid = pl.cdiv(mp, tm)

    w, b_row = _pack_params(A, b, p)
    seed_arr = jnp.asarray([seed], dtype=jnp.int32)

    # NOTE: output dtype kept at A.dtype (f32) to match the module semantics;
    # a bf16 out_shape here would halve the only remaining HBM stream.
    out = pl.pallas_call(
        _sample_affine_kernel,
        out_shape=jax.ShapeDtypeStruct((mp, k), A.dtype),
        grid_spec=pltpu.PrefetchScalarGridSpec(
            num_scalar_prefetch=1,                                 # seed -> SMEM
            grid=(grid,),
            in_specs=[
                pl.BlockSpec((k, k), lambda i, seed_ref: (0, 0)),  # W
                pl.BlockSpec((1, k), lambda i, seed_ref: (0, 0)),  # bias row
            ],
            out_specs=pl.BlockSpec((tm, k), lambda i, seed_ref: (i, 0)),
        ),
        compiler_params=_compiler_params(),
        cost_estimate=pl.CostEstimate(
            flops=2 * mp * k * k,
            transcendentals=4 * mp * k,        # Box-Muller-class normal generation
            bytes_accessed=4 * (mp * k + k * k + k),
        ),
    )(seed_arr, w, b_row)

    y2d = out.reshape(rows, d)                 # free reshape
    if rows != m:
        # TODO(synk): ragged packing tail slice; common shapes hit rows == m.
        y2d = y2d[:m]
    return y2d.reshape(batch_size, n_samples, d)


def simple_affine_normal_forward(A, b, n_samples=1, batch_size=1, seed=0):
    """SimpleAffineNormal.forward: unconditional samples [batch_size, n_samples, D]."""
    if _tpu_backend():
        return _forward_fused_sampling(A, b, n_samples, batch_size, seed)
    # Non-TPU backend: host-side sampling feeding the same packed affine kernel.
    x = jax.random.normal(jax.random.PRNGKey(seed),
                          (batch_size, n_samples, A.shape[0]), dtype=A.dtype)
    return affine_transform(A, b, x)


def get_mean_and_covariance(A, b):
    # Parameter-sized plain-JAX op (not a kernel candidate).
    return b, A @ A.T
# TODO(synk): crps_loss / log_likelihood (MultivariateNormal log-prob, Cholesky
# solve) are not part of the forward pass and are left to plain JAX.


# ----------------------------- demo / check --------------------------------- #

if __name__ == "__main__":
    output_dim = 32
    batch_size = 2
    n_samples = 8

    key = jax.random.PRNGKey(0)
    k_a, k_b, k_x1, k_x2, k_x3 = jax.random.split(key, 5)

    # Deterministic "parameters" (equivalent of torch.randn init in __init__).
    A = jax.random.normal(k_a, (output_dim, output_dim), dtype=jnp.float32)
    b = jax.random.normal(k_b, (output_dim,), dtype=jnp.float32)

    # 1) Exact check, tiny aligned shape (single full-array tile, no pad/slice).
    x1 = jax.random.normal(k_x1, (batch_size, n_samples, output_dim), dtype=jnp.float32)
    y1 = jax.block_until_ready(affine_transform(A, b, x1))
    assert y1.shape == (batch_size, n_samples, output_dim)
    assert jnp.allclose(y1, x1 @ A.T + b, atol=1e-5, rtol=1e-5)

    # 2) Exact check, 2-tile grid with a ragged last tile (no pad/slice copies).
    x2 = jax.random.normal(k_x2, (2, 52, output_dim), dtype=jnp.float32)
    y2 = jax.block_until_ready(affine_transform(A, b, x2))
    assert jnp.allclose(y2, x2 @ A.T + b, atol=1e-5, rtol=1e-5)

    # 3) Exact check, ragged packing tail (m not divisible by the packing factor).
    x3 = jax.random.normal(k_x3, (1, 10, output_dim), dtype=jnp.float32)
    y3 = jax.block_until_ready(affine_transform(A, b, x3))
    assert jnp.allclose(y3, x3 @ A.T + b, atol=1e-5, rtol=1e-5)

    # 4) The module's actual forward: unconditional samples with fused in-kernel
    #    Gaussian sampling (no x read from HBM).
    samples = jax.block_until_ready(
        simple_affine_normal_forward(A, b, n_samples=n_samples,
                                     batch_size=batch_size, seed=1234))
    assert samples.shape == (batch_size, n_samples, output_dim)
    assert bool(jnp.all(jnp.isfinite(samples)))

    mean, cov = jax.block_until_ready(get_mean_and_covariance(A, b))
    assert mean.shape == (output_dim,) and cov.shape == (output_dim, output_dim)

    print("KERNEL_OK")
</pallas_src>

<mosaic_0001>
module attributes {stable_mosaic.version = 11 : i64} {
  func.func @_affine_kernel(%arg0: i32, %arg1: memref<4x128xf32, #tpu.memory_space<vmem>>, %arg2: memref<128x128xf32, #tpu.memory_space<vmem>>, %arg3: memref<1x128xf32, #tpu.memory_space<vmem>>, %arg4: memref<4x128xf32, #tpu.memory_space<vmem>>) attributes {dimension_semantics = [#tpu.dimension_semantics<parallel>], iteration_bounds = array<i64: 1>, scalar_prefetch = 0 : i64, scratch_operands = 0 : i64, tpu.core_type = #tpu.core_type<tc>, window_params = [{transform_indices = @transform_0, window_bounds = array<i64: 4, 128>}, {pipeline_mode = #tpu.pipeline_mode<synchronous>, transform_indices = @transform_1, window_bounds = array<i64: 128, 128>}, {pipeline_mode = #tpu.pipeline_mode<synchronous>, transform_indices = @transform_2, window_bounds = array<i64: 1, 128>}, {transform_indices = @transform_3, window_bounds = array<i64: 4, 128>}]} {
    %c0 = arith.constant 0 : index
    %c0_0 = arith.constant 0 : index
    %0 = vector.load %arg1[%c0, %c0_0] : memref<4x128xf32, #tpu.memory_space<vmem>>, vector<4x128xf32>
    %c0_1 = arith.constant 0 : index
    %c0_2 = arith.constant 0 : index
    %1 = vector.load %arg2[%c0_1, %c0_2] : memref<128x128xf32, #tpu.memory_space<vmem>>, vector<128x128xf32>
    %cst = arith.constant dense<0.000000e+00> : vector<4x128xf32>
    %2 = tpu.matmul %0, %1, %cst {dimension_numbers = #tpu.dot_dimension_numbers<[1], [0], [0], [1], [0, 0, 1, 1], [], []>} : vector<4x128xf32>, vector<128x128xf32>, vector<4x128xf32> -> vector<4x128xf32>
    %c0_3 = arith.constant 0 : index
    %c0_4 = arith.constant 0 : index
    %3 = vector.load %arg3[%c0_3, %c0_4] : memref<1x128xf32, #tpu.memory_space<vmem>>, vector<1x128xf32>
    %4 = vector.broadcast %3 : vector<1x128xf32> to vector<4x128xf32>
    %5 = arith.addf %2, %4 : vector<4x128xf32>
    %c0_5 = arith.constant 0 : index
    %c0_6 = arith.constant 0 : index
    %6 = vector.load %arg4[%c0_5, %c0_6] : memref<4x128xf32, #tpu.memory_space<vmem>>, vector<4x128xf32>
    tpu.vector_store %arg4[%c0_5, %c0_6], %5 {strides = array<i32>} : memref<4x128xf32, #tpu.memory_space<vmem>>, vector<4x128xf32>,
    return
  }
  func.func @transform_0(%arg0: i32) -> (i32, i32) {
    %c0_i32 = arith.constant 0 : i32
    %c0_i32_0 = arith.constant 0 : i32
    return %arg0, %c0_i32 : i32, i32
  }
  func.func @transform_1(%arg0: i32) -> (i32, i32) {
    %c0_i32 = arith.constant 0 : i32
    %c0_i32_0 = arith.constant 0 : i32
    %c0_i32_1 = arith.constant 0 : i32
    return %c0_i32, %c0_i32_0 : i32, i32
  }
  func.func @transform_2(%arg0: i32) -> (i32, i32) {
    %c0_i32 = arith.constant 0 : i32
    %c0_i32_0 = arith.constant 0 : i32
    %c0_i32_1 = arith.constant 0 : i32
    return %c0_i32, %c0_i32_0 : i32, i32
  }
  func.func @transform_3(%arg0: i32) -> (i32, i32) {
    %c0_i32 = arith.constant 0 : i32
    %c0_i32_0 = arith.constant 0 : i32
    return %arg0, %c0_i32 : i32, i32
  }
}

</mosaic_0001>

<llo_original>
// kernel: tpu_custom_call.1
$region0: #{tpu_custom_call.1}
  #allocation0 [shape = 'u32[]', space=smem, size = 0x4, offset = 0x4, fixed_abs, tag = 'smem constant byte address 0x4 - core index']
  #allocation1 [shape = 'u32[144,128]{1,0:T(1,128)}', space=vmem, size = 0x12000, scoped, tag = 'internal scratch']
  %s0 = inlined_call_operand.hbm [shape: f32[4,128], index: 0, kind: input, shape index: {}]
  %s1 = inlined_call_operand.hbm [shape: f32[128,128], index: 1, kind: input, shape index: {}]
  %s2 = inlined_call_operand.vmem [shape: f32[1,128], index: 2, kind: input, shape index: {}]
  %s3 = inlined_call_operand.hbm [shape: f32[4,128], index: 3, kind: output, shape index: {}]
  %s4 = sld [smem:[#allocation0]]
  $region30: #{tpu_custom_call.1} parent=0
    _
  %s6 = ssub.s32 1, %s4
  %s7 = scalar_select 0, %s6, %s4
  $region1: #{tpu_custom_call.1} parent=0
    #allocation2 [shape = 'u8[2048]{0}', space=vmem, size = 0x800, scoped, tag = 'input window, operand 0, single buffered']
    #allocation3 [shape = 's32[1]{0}', space=sflag, size = 0x4, scoped, tag = 'scoped memory for tpu_custom_call.1']
    #allocation4 [shape = 's32[1]{0}', space=sflag, size = 0x4, scoped, tag = 'scoped memory for tpu_custom_call.1']
    #allocation5 [shape = 'u8[65536]{0}', space=vmem, size = 0x10000, scoped, tag = 'input window, operand 1, single buffered']
    #allocation6 [shape = 's32[1]{0}', space=sflag, size = 0x4, scoped, tag = 'scoped memory for tpu_custom_call.1']
    #allocation7 [shape = 'u8[2048]{0}', space=vmem, size = 0x800, scoped, tag = 'output window, operand 0, single buffered']
    %8 = vsyncpa [#allocation3], 0
    %9 = vsyncpa [#allocation6], 0
    %10 = vsyncpa [#allocation4], 0
    // Predicated region
    $region2: #{tpu_custom_call.1} parent=1 // pred_check
      _
    $region3: #{tpu_custom_call.1} parent=1 // pred_check_branch
      %12 = sbr.rel (0) target = $region5
    $region4: #{tpu_custom_call.1} parent=1 // pred_region
      %s14 = ssub.s32 64, 64
      %15 = vsyncadd [#allocation3], %s14
      %s17 = sshll.u32 [#allocation2], 4
      %s18 = int_to_ptr.vmem [resolvable:$true] %s17
      %20 = dma.hbm_to_vmem [thread:$0]  %s0, 64, %s18, [#allocation3]
    $region5: #{tpu_custom_call.1} parent=1 // pred_fallthru
      _
    // Predicated region
    $region6: #{tpu_custom_call.1} parent=1 // pred_check
      _
    $region7: #{tpu_custom_call.1} parent=1 // pred_check_branch
      %22 = sbr.rel (0) target = $region9
    $region8: #{tpu_custom_call.1} parent=1 // pred_region
      %s24 = ssub.s32 2048, 2048
      %25 = vsyncadd [#allocation6], %s24
      %s26 = sshll.u32 [#allocation5], 4
      %s27 = int_to_ptr.vmem [resolvable:$true] %s26
      %32 = dma.hbm_to_vmem [thread:$0]  %s1, 2048, %s27, [#allocation6], 128, 128, 8
    $region9: #{tpu_custom_call.1} parent=1 // pred_fallthru
      _
    // Predicated region
    $region10: #{tpu_custom_call.1} parent=1 // pred_check
      _
    $region11: #{tpu_custom_call.1} parent=1 // pred_check_branch
      %34 = sbr.rel (0) target = $region13
    $region12: #{tpu_custom_call.1} parent=1 // pred_region
      _
    $region13: #{tpu_custom_call.1} parent=1 // pred_fallthru
      _
    // Predicated region
    $region14: #{tpu_custom_call.1} parent=1 // pred_check
      _
    $region15: #{tpu_custom_call.1} parent=1 // pred_check_branch
      %36 = sbr.rel (0) target = $region17
    $region16: #{tpu_custom_call.1} parent=1 // pred_region
      %37 = dma.done [#allocation3], 64
    $region17: #{tpu_custom_call.1} parent=1 // pred_fallthru
      _
    // Predicated region
    $region18: #{tpu_custom_call.1} parent=1 // pred_check
      _
    $region19: #{tpu_custom_call.1} parent=1 // pred_check_branch
      %39 = sbr.rel (0) target = $region21
    $region20: #{tpu_custom_call.1} parent=1 // pred_region
      %40 = dma.done [#allocation6], 2048
    $region21: #{tpu_custom_call.1} parent=1 // pred_fallthru
      _
    %v41 = vld [vmem:[#allocation2] sm:$0xf]
    %v42 = vld [vmem:[#allocation5] sm:$0xff]
    %v43 = vld [vmem:[#allocation5 + $0x8] sm:$0xff]
    %v44 = vld [vmem:[#allocation5 + $0x10] sm:$0xff]
    %v45 = vld [vmem:[#allocation5 + $0x18] sm:$0xff]
    %v46 = vld [vmem:[#allocation5 + $0x20] sm:$0xff]
    %v47 = vld [vmem:[#allocation5 + $0x28] sm:$0xff]
    %v48 = vld [vmem:[#allocation5 + $0x30] sm:$0xff]
    %v49 = vld [vmem:[#allocation5 + $0x38] sm:$0xff]
    %v50 = vld [vmem:[#allocation5 + $0x40] sm:$0xff]
    %v51 = vld [vmem:[#allocation5 + $0x48] sm:$0xff]
    %v52 = vld [vmem:[#allocation5 + $0x50] sm:$0xff]
    %v53 = vld [vmem:[#allocation5 + $0x58] sm:$0xff]
    %v54 = vld [vmem:[#allocation5 + $0x60] sm:$0xff]
    %v55 = vld [vmem:[#allocation5 + $0x68] sm:$0xff]
    %v56 = vld [vmem:[#allocation5 + $0x70] sm:$0xff]
    %v57 = vld [vmem:[#allocation5 + $0x78] sm:$0xff]
    %v58 = vld [vmem:[%s2] sm:$0x1]
    %v60 = vlaneseq
    %v61 = vshrl.u32 %v60, 7
    %v62 = vsub.s32 0, %v61
    %v63 = vrot.slane %v58, %v62
    %65 = vmatprep.subr.mxu0 0.0
    %66 = vmatpush1.msra.mxu0 %v57
    %67 = vmatprep.subr.mxu0 0.0
    %68 = vmatpush1.msra.mxu0 %v56
    %69 = vmatprep.subr.mxu0 0.0
    %70 = vmatpush1.msra.mxu0 %v55
    %71 = vmatprep.subr.mxu0 0.0
    %72 = vmatpush1.msra.mxu0 %v54
    %73 = vmatprep.subr.mxu0 0.0
    %74 = vmatpush1.msra.mxu0 %v53
    %75 = vmatprep.subr.mxu0 0.0
    %76 = vmatpush1.msra.mxu0 %v52
    %77 = vmatprep.subr.mxu0 0.0
    %78 = vmatpush1.msra.mxu0 %v51
    %79 = vmatprep.subr.mxu0 0.0
    %80 = vmatpush1.msra.mxu0 %v50
    %81 = vmatprep.subr.mxu0 0.0
    %82 = vmatpush1.msra.mxu0 %v49
    %83 = vmatprep.subr.mxu0 0.0
    %84 = vmatpush1.msra.mxu0 %v48
    %85 = vmatprep.subr.mxu0 0.0
    %86 = vmatpush1.msra.mxu0 %v47
    %87 = vmatprep.subr.mxu0 0.0
    %88 = vmatpush1.msra.mxu0 %v46
    %89 = vmatprep.subr.mxu0 0.0
    %90 = vmatpush1.msra.mxu0 %v45
    %91 = vmatprep.subr.mxu0 0.0
    %92 = vmatpush1.msra.mxu0 %v44
    %93 = vmatprep.subr.mxu0 0.0
    %94 = vmatpush1.msra.mxu0 %v43
    %95 = vmatprep.subr.mxu0 0.0
    %96 = vmatpush1.msra.mxu0 %v42
    %97 = vmatprep.subr.mxu0 0.0
    %98 = vmatpush2.msra.mxu0 0.0
    %99 = vmatprep.subr.mxu0 0.0
    %100 = vmatpush2.msra.mxu0 0.0
    %101 = vmatprep.subr.mxu0 0.0
    %102 = vmatpush2.msra.mxu0 0.0
    %103 = vmatprep.subr.mxu0 0.0
    %104 = vmatpush2.msra.mxu0 0.0
    %105 = vmatprep.subr.mxu0 0.0
    %106 = vmatpush2.msra.mxu0 0.0
    %107 = vmatprep.subr.mxu0 0.0
    %108 = vmatpush2.msra.mxu0 0.0
    %109 = vmatprep.subr.mxu0 0.0
    %110 = vmatpush2.msra.mxu0 0.0
    %111 = vmatprep.subr.mxu0 0.0
    %112 = vmatpush2.msra.mxu0 0.0
    %113 = vmatprep.subr.mxu0 0.0
    %114 = vmatpush2.msra.mxu0 0.0
    %115 = vmatprep.subr.mxu0 0.0
    %116 = vmatpush2.msra.mxu0 0.0
    %117 = vmatprep.subr.mxu0 0.0
    %118 = vmatpush2.msra.mxu0 0.0
    %119 = vmatprep.subr.mxu0 0.0
    %120 = vmatpush2.msra.mxu0 0.0
    %121 = vmatprep.subr.mxu0 0.0
    %122 = vmatpush2.msra.mxu0 0.0
    %123 = vmatprep.subr.mxu0 0.0
    %124 = vmatpush2.msra.mxu0 0.0
    %125 = vmatprep.subr.mxu0 0.0
    %126 = vmatpush2.msra.mxu0 0.0
    %127 = vmatprep.subr.mxu0 0.0
    %128 = vmatpush2.msra.mxu0 0.0
    %129 = vmatprep.mubr.f32.mxu0 0.0
    %130 = vmatmul.mubr.f32.gmra.mxu0 %v41
    %v131 = vpop.f32.mrf.mxu0
    %v132 = vadd.f32 %v63, %v131
    %v133 = vpop.f32.mrf.mxu0
    %134 = vdwg.mxu0
    %135 = vst [vmem:[#allocation7] sm:$0xf] %v132
    // Predicated region
    $region22: #{tpu_custom_call.1} parent=1 // pred_check
      _
    $region23: #{tpu_custom_call.1} parent=1 // pred_check_branch
      %137 = sbr.rel (0) target = $region25
    $region24: #{tpu_custom_call.1} parent=1 // pred_region
      %s139 = ssub.s32 64, 64
      %140 = vsyncadd [#allocation4], %s139
      %s142 = sshll.u32 [#allocation7], 4
      %s143 = int_to_ptr.vmem [resolvable:$true] %s142
      %145 = dma.vmem_to_hbm [thread:$0]  %s143, 64, %s3, [#allocation4]
    $region25: #{tpu_custom_call.1} parent=1 // pred_fallthru
      _
    // Predicated region
    $region26: #{tpu_custom_call.1} parent=1 // pred_check
      _
    $region27: #{tpu_custom_call.1} parent=1 // pred_check_branch
      %147 = sbr.rel (0) target = $region29
    $region28: #{tpu_custom_call.1} parent=1 // pred_region
      %148 = dma.done [#allocation4], 64
    $region29: #{tpu_custom_call.1} parent=1 // pred_fallthru
      _
    %149 = vsyncpa [#allocation3], 1
    %150 = vsyncpa [#allocation6], 1
    %151 = vsyncpa [#allocation4], 1

</llo_original>
